<compile_context>
chip_gen: v6e
topology: v6e:2x2x1
jax: 0.10.0
libtpu: 0.0.40
codegen_flags: <defaults>
</compile_context>

<pallas_src>
import jax
import jax.numpy as jnp
from jax.experimental import pallas as pl
from jax.experimental.pallas import tpu as pltpu

EPS = 1e-5
LANES = 128          # lane width of one vreg; output / slab are padded to this
NEG_BIG = -1e30      # "minus infinity" for masking padded softmax lanes


def downstream_task_nn(x, params):
    """x: (B, input_size) float32. params: dict of weights (see init_params)."""
    B, _ = x.shape
    H1 = params["w1"].shape[1]
    H2 = params["w2"].shape[1]
    OUT = params["w3"].shape[1]
    assert H1 <= LANES and H2 <= LANES and OUT <= LANES, "slab packing assumes F <= 128"

    # ---- pack parameters (wrapper-side, cheap XLA ops) ----
    # fc3 weight padded to 128 lanes (zero columns -> zero logits in padded lanes).
    w3p = jnp.zeros((H2, LANES), jnp.float32).at[:, :OUT].set(params["w3"])
    # Single (8,128) slab holding every (1,F) vector:
    #   row 0: gamma1   row 1: beta1   row 2: gamma2   row 3: beta2
    #   row 4: fc3 bias (real lanes) / -1e30 (padded lanes, masks softmax)
    slab = jnp.zeros((8, LANES), jnp.float32)
    slab = slab.at[0, :H1].set(params["g1"].reshape(-1))
    slab = slab.at[1, :H1].set(params["beta1"].reshape(-1))
    slab = slab.at[2, :H2].set(params["g2"].reshape(-1))
    slab = slab.at[3, :H2].set(params["beta2"].reshape(-1))
    b3_row = jnp.full((LANES,), NEG_BIG, jnp.float32).at[:OUT].set(params["b3"].reshape(-1))
    slab = slab.at[4].set(b3_row)

    def kernel(x_ref, w1_ref, w2_ref, w3_ref, vec_ref, o_ref):
        x_v = x_ref[...]                                              # (B, in)

        # ---- fc1 (bias cancelled by BN) + BatchNorm1d(train) + ReLU ----
        h = jnp.dot(x_v, w1_ref[...], preferred_element_type=jnp.float32)
        mu = jnp.mean(h, axis=0, keepdims=True)
        var = jnp.mean((h - mu) * (h - mu), axis=0, keepdims=True)    # biased variance
        scale = vec_ref[0:1, :H1] * jax.lax.rsqrt(var + EPS)          # gamma * rsqrt
        shift = vec_ref[1:2, :H1] - mu * scale                        # beta - mu*scale
        h = jnp.maximum(h * scale + shift, 0.0)

        # ---- fc2 (bias cancelled by BN) + BatchNorm1d(train) + ReLU ----
        h = jnp.dot(h, w2_ref[...], preferred_element_type=jnp.float32)
        mu = jnp.mean(h, axis=0, keepdims=True)
        var = jnp.mean((h - mu) * (h - mu), axis=0, keepdims=True)
        scale = vec_ref[2:3, :H2] * jax.lax.rsqrt(var + EPS)
        shift = vec_ref[3:4, :H2] - mu * scale
        h = jnp.maximum(h * scale + shift, 0.0)

        # ---- fc3 (lane-padded to 128) + Softmax over the full vreg ----
        # padded lanes get logit = 0 + (-1e30)  ->  exp() underflows to exactly 0.
        logits = jnp.dot(h, w3_ref[...], preferred_element_type=jnp.float32) + vec_ref[4:5, :]
        m = jnp.max(logits, axis=1, keepdims=True)
        e = jnp.exp(logits - m)
        denom = jnp.sum(e, axis=1, keepdims=True)
        r = pl.reciprocal(denom, approx=True)                         # EUP slot
        r = r * (2.0 - denom * r)                                     # 1 Newton step -> <1e-7 rel err
        o_ref[...] = (e * r).astype(o_ref.dtype)                      # lane-dense (B,128) store

    args = (x, params["w1"], params["w2"], w3p, slab)

    def full_spec(shape):
        return pl.BlockSpec(shape, lambda i, _shape=shape: tuple(0 for _ in _shape))

    out_pad = pl.pallas_call(
        kernel,
        out_shape=jax.ShapeDtypeStruct((B, LANES), jnp.float32),
        grid_spec=pltpu.PrefetchScalarGridSpec(
            num_scalar_prefetch=0,
            grid=(1,),
            in_specs=[full_spec(a.shape) for a in args],
            out_specs=full_spec((B, LANES)),
        ),
        compiler_params=pltpu.CompilerParams(
            dimension_semantics=("arbitrary",)),
    )(*args)

    return out_pad[:, :OUT]


def init_params(key, input_size, hidden_dim1, hidden_dim2, output_dim):
    """Deterministic synthetic init. Linear weights stored as (in, out);
    BatchNorm gamma=1, beta=0 (PyTorch defaults). b1/b2 are kept here only
    for the reference path — the kernel omits them (cancelled by BatchNorm)."""
    k1, k2, k3, k4, k5, k6 = jax.random.split(key, 6)

    def lin(kw, kb, fan_in, fan_out):
        bound = 1.0 / jnp.sqrt(fan_in)
        w = jax.random.uniform(kw, (fan_in, fan_out), jnp.float32, -bound, bound)
        b = jax.random.uniform(kb, (1, fan_out), jnp.float32, -bound, bound)
        return w, b

    w1, b1 = lin(k1, k2, input_size, hidden_dim1)
    w2, b2 = lin(k3, k4, hidden_dim1, hidden_dim2)
    w3, b3 = lin(k5, k6, hidden_dim2, output_dim)

    return dict(
        w1=w1, b1=b1,
        g1=jnp.ones((1, hidden_dim1), jnp.float32),
        beta1=jnp.zeros((1, hidden_dim1), jnp.float32),
        w2=w2, b2=b2,
        g2=jnp.ones((1, hidden_dim2), jnp.float32),
        beta2=jnp.zeros((1, hidden_dim2), jnp.float32),
        w3=w3, b3=b3,
    )


def _reference(x, p):
    """Pure-JAX reference matching the PyTorch module forward (training-mode BN),
    including the fc1/fc2 biases that the kernel drops (they cancel under BN)."""
    def bn(h):
        mu = jnp.mean(h, axis=0, keepdims=True)
        var = jnp.mean((h - mu) ** 2, axis=0, keepdims=True)
        return (h - mu) / jnp.sqrt(var + EPS)

    h = jnp.maximum(bn(x @ p["w1"] + p["b1"]) * p["g1"] + p["beta1"], 0.0)
    h = jnp.maximum(bn(h @ p["w2"] + p["b2"]) * p["g2"] + p["beta2"], 0.0)
    logits = h @ p["w3"] + p["b3"]
    return jax.nn.softmax(logits, axis=1)


if __name__ == "__main__":
    # Small shapes consistent with the module: batch=8, input=32, h1=64, h2=32, out=16
    B, INPUT, H1, H2, OUT = 8, 32, 64, 32, 16

    key = jax.random.PRNGKey(0)
    kx, kp = jax.random.split(key)
    x = jax.random.normal(kx, (B, INPUT), dtype=jnp.float32)
    params = init_params(kp, INPUT, H1, H2, OUT)

    out = downstream_task_nn(x, params)
    out = jax.block_until_ready(out)

    ref = _reference(x, params)
    assert out.shape == (B, OUT)
    assert jnp.allclose(out, ref, atol=1e-5, rtol=1e-5), "mismatch vs reference"
    assert jnp.allclose(jnp.sum(out, axis=1), 1.0, atol=1e-5), "softmax rows must sum to 1"

    print("KERNEL_OK")
</pallas_src>

<mosaic_0001>
module attributes {stable_mosaic.version = 11 : i64} {
  func.func @kernel(%arg0: i32, %arg1: memref<8x32xf32, #tpu.memory_space<vmem>>, %arg2: memref<32x64xf32, #tpu.memory_space<vmem>>, %arg3: memref<64x32xf32, #tpu.memory_space<vmem>>, %arg4: memref<32x128xf32, #tpu.memory_space<vmem>>, %arg5: memref<8x128xf32, #tpu.memory_space<vmem>>, %arg6: memref<8x128xf32, #tpu.memory_space<vmem>>) attributes {dimension_semantics = [#tpu.dimension_semantics<arbitrary>], iteration_bounds = array<i64: 1>, scalar_prefetch = 0 : i64, scratch_operands = 0 : i64, tpu.core_type = #tpu.core_type<tc>, window_params = [{pipeline_mode = #tpu.pipeline_mode<synchronous>, transform_indices = @transform_0, window_bounds = array<i64: 8, 32>}, {pipeline_mode = #tpu.pipeline_mode<synchronous>, transform_indices = @transform_1, window_bounds = array<i64: 32, 64>}, {pipeline_mode = #tpu.pipeline_mode<synchronous>, transform_indices = @transform_2, window_bounds = array<i64: 64, 32>}, {pipeline_mode = #tpu.pipeline_mode<synchronous>, transform_indices = @transform_3, window_bounds = array<i64: 32, 128>}, {pipeline_mode = #tpu.pipeline_mode<synchronous>, transform_indices = @transform_4, window_bounds = array<i64: 8, 128>}, {pipeline_mode = #tpu.pipeline_mode<synchronous>, transform_indices = @transform_5, window_bounds = array<i64: 8, 128>}]} {
    %c0 = arith.constant 0 : index
    %c0_0 = arith.constant 0 : index
    %0 = vector.load %arg1[%c0, %c0_0] : memref<8x32xf32, #tpu.memory_space<vmem>>, vector<8x32xf32>
    %c0_1 = arith.constant 0 : index
    %c0_2 = arith.constant 0 : index
    %1 = vector.load %arg2[%c0_1, %c0_2] : memref<32x64xf32, #tpu.memory_space<vmem>>, vector<32x64xf32>
    %cst = arith.constant dense<0.000000e+00> : vector<8x64xf32>
    %2 = tpu.matmul %0, %1, %cst {dimension_numbers = #tpu.dot_dimension_numbers<[1], [0], [0], [1], [0, 0, 1, 1], [], []>} : vector<8x32xf32>, vector<32x64xf32>, vector<8x64xf32> -> vector<8x64xf32>
    %cst_3 = arith.constant dense<0.000000e+00> : vector<64xf32>
    %3 = vector.multi_reduction <add>, %2, %cst_3 [0] : vector<8x64xf32> to vector<64xf32>
    %4 = vector.shape_cast %3 : vector<64xf32> to vector<1x64xf32>
    %cst_4 = arith.constant 8.000000e+00 : f32
    %5 = vector.broadcast %cst_4 : f32 to vector<1x64xf32>
    %6 = arith.divf %4, %5 : vector<1x64xf32>
    %7 = vector.broadcast %6 : vector<1x64xf32> to vector<8x64xf32>
    %8 = arith.subf %2, %7 : vector<8x64xf32>
    %9 = vector.broadcast %6 : vector<1x64xf32> to vector<8x64xf32>
    %10 = arith.subf %2, %9 : vector<8x64xf32>
    %11 = arith.mulf %8, %10 : vector<8x64xf32>
    %cst_5 = arith.constant dense<0.000000e+00> : vector<64xf32>
    %12 = vector.multi_reduction <add>, %11, %cst_5 [0] : vector<8x64xf32> to vector<64xf32>
    %13 = vector.shape_cast %12 : vector<64xf32> to vector<1x64xf32>
    %cst_6 = arith.constant 8.000000e+00 : f32
    %14 = vector.broadcast %cst_6 : f32 to vector<1x64xf32>
    %15 = arith.divf %13, %14 : vector<1x64xf32>
    %c0_7 = arith.constant 0 : index
    %c0_8 = arith.constant 0 : index
    %16 = vector.load %arg5[%c0_7, %c0_8] : memref<8x128xf32, #tpu.memory_space<vmem>>, vector<1x64xf32>
    %cst_9 = arith.constant 9.99999974E-6 : f32
    %17 = vector.broadcast %cst_9 : f32 to vector<1x64xf32>
    %18 = arith.addf %15, %17 : vector<1x64xf32>
    %19 = math.rsqrt %18 : vector<1x64xf32>
    %20 = arith.mulf %16, %19 : vector<1x64xf32>
    %c1 = arith.constant 1 : index
    %c0_10 = arith.constant 0 : index
    %21 = vector.load %arg5[%c1, %c0_10] : memref<8x128xf32, #tpu.memory_space<vmem>>, vector<1x64xf32>
    %22 = arith.mulf %6, %20 : vector<1x64xf32>
    %23 = arith.subf %21, %22 : vector<1x64xf32>
    %24 = vector.broadcast %20 : vector<1x64xf32> to vector<8x64xf32>
    %25 = arith.mulf %2, %24 : vector<8x64xf32>
    %26 = vector.broadcast %23 : vector<1x64xf32> to vector<8x64xf32>
    %27 = arith.addf %25, %26 : vector<8x64xf32>
    %cst_11 = arith.constant 0.000000e+00 : f32
    %28 = vector.broadcast %cst_11 : f32 to vector<8x64xf32>
    %29 = arith.maximumf %27, %28 : vector<8x64xf32>
    %c0_12 = arith.constant 0 : index
    %c0_13 = arith.constant 0 : index
    %30 = vector.load %arg3[%c0_12, %c0_13] : memref<64x32xf32, #tpu.memory_space<vmem>>, vector<64x32xf32>
    %cst_14 = arith.constant dense<0.000000e+00> : vector<8x32xf32>
    %31 = tpu.matmul %29, %30, %cst_14 {dimension_numbers = #tpu.dot_dimension_numbers<[1], [0], [0], [1], [0, 0, 1, 1], [], []>} : vector<8x64xf32>, vector<64x32xf32>, vector<8x32xf32> -> vector<8x32xf32>
    %cst_15 = arith.constant dense<0.000000e+00> : vector<32xf32>
    %32 = vector.multi_reduction <add>, %31, %cst_15 [0] : vector<8x32xf32> to vector<32xf32>
    %33 = vector.shape_cast %32 : vector<32xf32> to vector<1x32xf32>
    %cst_16 = arith.constant 8.000000e+00 : f32
    %34 = vector.broadcast %cst_16 : f32 to vector<1x32xf32>
    %35 = arith.divf %33, %34 : vector<1x32xf32>
    %36 = vector.broadcast %35 : vector<1x32xf32> to vector<8x32xf32>
    %37 = arith.subf %31, %36 : vector<8x32xf32>
    %38 = vector.broadcast %35 : vector<1x32xf32> to vector<8x32xf32>
    %39 = arith.subf %31, %38 : vector<8x32xf32>
    %40 = arith.mulf %37, %39 : vector<8x32xf32>
    %cst_17 = arith.constant dense<0.000000e+00> : vector<32xf32>
    %41 = vector.multi_reduction <add>, %40, %cst_17 [0] : vector<8x32xf32> to vector<32xf32>
    %42 = vector.shape_cast %41 : vector<32xf32> to vector<1x32xf32>
    %cst_18 = arith.constant 8.000000e+00 : f32
    %43 = vector.broadcast %cst_18 : f32 to vector<1x32xf32>
    %44 = arith.divf %42, %43 : vector<1x32xf32>
    %c2 = arith.constant 2 : index
    %c0_19 = arith.constant 0 : index
    %45 = vector.load %arg5[%c2, %c0_19] : memref<8x128xf32, #tpu.memory_space<vmem>>, vector<1x32xf32>
    %cst_20 = arith.constant 9.99999974E-6 : f32
    %46 = vector.broadcast %cst_20 : f32 to vector<1x32xf32>
    %47 = arith.addf %44, %46 : vector<1x32xf32>
    %48 = math.rsqrt %47 : vector<1x32xf32>
    %49 = arith.mulf %45, %48 : vector<1x32xf32>
    %c3 = arith.constant 3 : index
    %c0_21 = arith.constant 0 : index
    %50 = vector.load %arg5[%c3, %c0_21] : memref<8x128xf32, #tpu.memory_space<vmem>>, vector<1x32xf32>
    %51 = arith.mulf %35, %49 : vector<1x32xf32>
    %52 = arith.subf %50, %51 : vector<1x32xf32>
    %53 = vector.broadcast %49 : vector<1x32xf32> to vector<8x32xf32>
    %54 = arith.mulf %31, %53 : vector<8x32xf32>
    %55 = vector.broadcast %52 : vector<1x32xf32> to vector<8x32xf32>
    %56 = arith.addf %54, %55 : vector<8x32xf32>
    %cst_22 = arith.constant 0.000000e+00 : f32
    %57 = vector.broadcast %cst_22 : f32 to vector<8x32xf32>
    %58 = arith.maximumf %56, %57 : vector<8x32xf32>
    %c0_23 = arith.constant 0 : index
    %c0_24 = arith.constant 0 : index
    %59 = vector.load %arg4[%c0_23, %c0_24] : memref<32x128xf32, #tpu.memory_space<vmem>>, vector<32x128xf32>
    %cst_25 = arith.constant dense<0.000000e+00> : vector<8x128xf32>
    %60 = tpu.matmul %58, %59, %cst_25 {dimension_numbers = #tpu.dot_dimension_numbers<[1], [0], [0], [1], [0, 0, 1, 1], [], []>} : vector<8x32xf32>, vector<32x128xf32>, vector<8x128xf32> -> vector<8x128xf32>
    %c4 = arith.constant 4 : index
    %c0_26 = arith.constant 0 : index
    %61 = vector.load %arg5[%c4, %c0_26] : memref<8x128xf32, #tpu.memory_space<vmem>>, vector<1x128xf32>
    %62 = vector.broadcast %61 : vector<1x128xf32> to vector<8x128xf32>
    %63 = arith.addf %60, %62 : vector<8x128xf32>
    %cst_27 = arith.constant dense<0xFF800000> : vector<8xf32>
    %64 = vector.multi_reduction <maximumf>, %63, %cst_27 [1] : vector<8x128xf32> to vector<8xf32>
    %65 = vector.shape_cast %64 : vector<8xf32> to vector<8x1xf32>
    %66 = vector.broadcast %65 : vector<8x1xf32> to vector<8x128xf32>
    %67 = arith.subf %63, %66 : vector<8x128xf32>
    %68 = math.exp %67 : vector<8x128xf32>
    %cst_28 = arith.constant dense<0.000000e+00> : vector<8xf32>
    %69 = vector.multi_reduction <add>, %68, %cst_28 [1] : vector<8x128xf32> to vector<8xf32>
    %70 = vector.shape_cast %69 : vector<8xf32> to vector<8x1xf32>
    %71 = tpu.reciprocal %70 {approx = true} : vector<8x1xf32> -> vector<8x1xf32>
    %72 = arith.mulf %70, %71 : vector<8x1xf32>
    %cst_29 = arith.constant 2.000000e+00 : f32
    %73 = vector.broadcast %cst_29 : f32 to vector<8x1xf32>
    %74 = arith.subf %73, %72 : vector<8x1xf32>
    %75 = arith.mulf %71, %74 : vector<8x1xf32>
    %76 = vector.broadcast %75 : vector<8x1xf32> to vector<8x128xf32>
    %77 = arith.mulf %68, %76 : vector<8x128xf32>
    %c0_30 = arith.constant 0 : index
    %c0_31 = arith.constant 0 : index
    %78 = vector.load %arg6[%c0_30, %c0_31] : memref<8x128xf32, #tpu.memory_space<vmem>>, vector<8x128xf32>
    tpu.vector_store %arg6[%c0_30, %c0_31], %77 {strides = array<i32>} : memref<8x128xf32, #tpu.memory_space<vmem>>, vector<8x128xf32>,
    return
  }
  func.func @transform_0(%arg0: i32) -> (i32, i32) {
    %c0_i32 = arith.constant 0 : i32
    %c0_i32_0 = arith.constant 0 : i32
    %c0_i32_1 = arith.constant 0 : i32
    return %c0_i32, %c0_i32_0 : i32, i32
  }
  func.func @transform_1(%arg0: i32) -> (i32, i32) {
    %c0_i32 = arith.constant 0 : i32
    %c0_i32_0 = arith.constant 0 : i32
    %c0_i32_1 = arith.constant 0 : i32
    return %c0_i32, %c0_i32_0 : i32, i32
  }
  func.func @transform_2(%arg0: i32) -> (i32, i32) {
    %c0_i32 = arith.constant 0 : i32
    %c0_i32_0 = arith.constant 0 : i32
    %c0_i32_1 = arith.constant 0 : i32
    return %c0_i32, %c0_i32_0 : i32, i32
  }
  func.func @transform_3(%arg0: i32) -> (i32, i32) {
    %c0_i32 = arith.constant 0 : i32
    %c0_i32_0 = arith.constant 0 : i32
    %c0_i32_1 = arith.constant 0 : i32
    return %c0_i32, %c0_i32_0 : i32, i32
  }
  func.func @transform_4(%arg0: i32) -> (i32, i32) {
    %c0_i32 = arith.constant 0 : i32
    %c0_i32_0 = arith.constant 0 : i32
    %c0_i32_1 = arith.constant 0 : i32
    return %c0_i32, %c0_i32_0 : i32, i32
  }
  func.func @transform_5(%arg0: i32) -> (i32, i32) {
    %c0_i32 = arith.constant 0 : i32
    %c0_i32_0 = arith.constant 0 : i32
    %c0_i32_1 = arith.constant 0 : i32
    return %c0_i32, %c0_i32_0 : i32, i32
  }
}

</mosaic_0001>

<llo_original>
// kernel: tpu_custom_call.1
$region0: #{tpu_custom_call.1}
  #allocation0 [shape = 'u32[]', space=smem, size = 0x4, offset = 0x4, fixed_abs, tag = 'smem constant byte address 0x4 - core index']
  #allocation1 [shape = 'u32[144,128]{1,0:T(1,128)}', space=vmem, size = 0x12000, scoped, tag = 'internal scratch']
  %s0 = inlined_call_operand.vmem [shape: f32[8,32], index: 0, kind: input, shape index: {}]
  %s1 = inlined_call_operand.vmem [shape: f32[32,64], index: 1, kind: input, shape index: {}]
  %s2 = inlined_call_operand.vmem [shape: f32[64,32], index: 2, kind: input, shape index: {}]
  %s3 = inlined_call_operand.vmem [shape: f32[32,128], index: 3, kind: input, shape index: {}]
  %s4 = inlined_call_operand.vmem [shape: f32[8,128], index: 4, kind: input, shape index: {}]
  %s5 = inlined_call_operand.hbm [shape: f32[8,128], index: 5, kind: output, shape index: {}]
  %s6 = sld [smem:[#allocation0]]
  $region30: #{tpu_custom_call.1} parent=0
    _
  %s8 = ssub.s32 1, %s6
  %s9 = scalar_select 0, %s8, %s6
  $region1: #{tpu_custom_call.1} parent=0
    #allocation2 [shape = 'u8[4096]{0}', space=vmem, size = 0x1000, scoped, tag = 'output window, operand 0, single buffered']
    #allocation3 [shape = 's32[1]{0}', space=sflag, size = 0x4, scoped, tag = 'scoped memory for tpu_custom_call.1']
    %10 = vsyncpa [#allocation3], 0
    // Predicated region
    $region2: #{tpu_custom_call.1} parent=1 // pred_check
      _
    $region3: #{tpu_custom_call.1} parent=1 // pred_check_branch
      %12 = sbr.rel (0) target = $region5
    $region4: #{tpu_custom_call.1} parent=1 // pred_region
      _
    $region5: #{tpu_custom_call.1} parent=1 // pred_fallthru
      _
    // Predicated region
    $region6: #{tpu_custom_call.1} parent=1 // pred_check
      _
    $region7: #{tpu_custom_call.1} parent=1 // pred_check_branch
      %14 = sbr.rel (0) target = $region9
    $region8: #{tpu_custom_call.1} parent=1 // pred_region
      _
    $region9: #{tpu_custom_call.1} parent=1 // pred_fallthru
      _
    // Predicated region
    $region10: #{tpu_custom_call.1} parent=1 // pred_check
      _
    $region11: #{tpu_custom_call.1} parent=1 // pred_check_branch
      %16 = sbr.rel (0) target = $region13
    $region12: #{tpu_custom_call.1} parent=1 // pred_region
      _
    $region13: #{tpu_custom_call.1} parent=1 // pred_fallthru
      _
    // Predicated region
    $region14: #{tpu_custom_call.1} parent=1 // pred_check
      _
    $region15: #{tpu_custom_call.1} parent=1 // pred_check_branch
      %18 = sbr.rel (0) target = $region17
    $region16: #{tpu_custom_call.1} parent=1 // pred_region
      _
    $region17: #{tpu_custom_call.1} parent=1 // pred_fallthru
      _
    // Predicated region
    $region18: #{tpu_custom_call.1} parent=1 // pred_check
      _
    $region19: #{tpu_custom_call.1} parent=1 // pred_check_branch
      %20 = sbr.rel (0) target = $region21
    $region20: #{tpu_custom_call.1} parent=1 // pred_region
      _
    $region21: #{tpu_custom_call.1} parent=1 // pred_fallthru
      _
    %v21 = vld [vmem:[%s0] sm:$0xff]
    %v22 = vld [vmem:[%s1] sm:$0xff]
    %v23 = vld [vmem:[%s1 + $0x8] sm:$0xff]
    %v24 = vld [vmem:[%s1 + $0x10] sm:$0xff]
    %v25 = vld [vmem:[%s1 + $0x18] sm:$0xff]
    %vm26 = vcmask 261120
    %v28 = vsel %vm26, %v21, 0
    %30 = vmatprep.subr.mxu0 0.0
    %31 = vmatpush1.msra.mxu0 0.0
    %32 = vmatprep.subr.mxu0 0.0
    %33 = vmatpush1.msra.mxu0 0.0
    %34 = vmatprep.subr.mxu0 0.0
    %35 = vmatpush1.msra.mxu0 0.0
    %36 = vmatprep.subr.mxu0 0.0
    %37 = vmatpush1.msra.mxu0 0.0
    %38 = vmatprep.subr.mxu0 0.0
    %39 = vmatpush1.msra.mxu0 0.0
    %40 = vmatprep.subr.mxu0 0.0
    %41 = vmatpush1.msra.mxu0 0.0
    %42 = vmatprep.subr.mxu0 0.0
    %43 = vmatpush1.msra.mxu0 0.0
    %44 = vmatprep.subr.mxu0 0.0
    %45 = vmatpush1.msra.mxu0 0.0
    %46 = vmatprep.subr.mxu0 0.0
    %47 = vmatpush1.msra.mxu0 0.0
    %48 = vmatprep.subr.mxu0 0.0
    %49 = vmatpush1.msra.mxu0 0.0
    %50 = vmatprep.subr.mxu0 0.0
    %51 = vmatpush1.msra.mxu0 0.0
    %52 = vmatprep.subr.mxu0 0.0
    %53 = vmatpush1.msra.mxu0 0.0
    %54 = vmatprep.subr.mxu0 0.0
    %55 = vmatpush1.msra.mxu0 %v25
    %56 = vmatprep.subr.mxu0 0.0
    %57 = vmatpush1.msra.mxu0 %v24
    %58 = vmatprep.subr.mxu0 0.0
    %59 = vmatpush1.msra.mxu0 %v23
    %60 = vmatprep.subr.mxu0 0.0
    %61 = vmatpush1.msra.mxu0 %v22
    %62 = vmatprep.subr.mxu0 0.0
    %63 = vmatpush2.msra.mxu0 0.0
    %64 = vmatprep.subr.mxu0 0.0
    %65 = vmatpush2.msra.mxu0 0.0
    %66 = vmatprep.subr.mxu0 0.0
    %67 = vmatpush2.msra.mxu0 0.0
    %68 = vmatprep.subr.mxu0 0.0
    %69 = vmatpush2.msra.mxu0 0.0
    %70 = vmatprep.subr.mxu0 0.0
    %71 = vmatpush2.msra.mxu0 0.0
    %72 = vmatprep.subr.mxu0 0.0
    %73 = vmatpush2.msra.mxu0 0.0
    %74 = vmatprep.subr.mxu0 0.0
    %75 = vmatpush2.msra.mxu0 0.0
    %76 = vmatprep.subr.mxu0 0.0
    %77 = vmatpush2.msra.mxu0 0.0
    %78 = vmatprep.subr.mxu0 0.0
    %79 = vmatpush2.msra.mxu0 0.0
    %80 = vmatprep.subr.mxu0 0.0
    %81 = vmatpush2.msra.mxu0 0.0
    %82 = vmatprep.subr.mxu0 0.0
    %83 = vmatpush2.msra.mxu0 0.0
    %84 = vmatprep.subr.mxu0 0.0
    %85 = vmatpush2.msra.mxu0 0.0
    %86 = vmatprep.subr.mxu0 0.0
    %87 = vmatpush2.msra.mxu0 0.0
    %88 = vmatprep.subr.mxu0 0.0
    %89 = vmatpush2.msra.mxu0 0.0
    %90 = vmatprep.subr.mxu0 0.0
    %91 = vmatpush2.msra.mxu0 0.0
    %92 = vmatprep.subr.mxu0 0.0
    %93 = vmatpush2.msra.mxu0 0.0
    %94 = vmatprep.mubr.f32.mxu0 0.0
    %95 = vmatmul.mubr.f32.gmra.mxu0 %v28
    %v96 = vpop.f32.mrf.mxu0
    %v97 = vadd.f32 0.0, %v96
    %v98 = vpop.f32.mrf.mxu0
    %99 = vdwg.mxu0
    %vm100 = vcmask 523264
    %v101 = vsel %vm100, %v97, 0.0
    %v102 = vrot.slane %v101, 4
    %v103 = vadd.f32 %v101, %v102
    %v104 = vrot.slane %v103, 2
    %v105 = vadd.f32 %v103, %v104
    %v106 = vrot.slane %v105, 1
    %v107 = vadd.f32 %v105, %v106
    %v108 = vrcp.pop 8.0
    %v109 = vmul.f32 %v107, %v108
    %v110 = vsub.f32 %v97, %v109
    %v111 = vmul.f32 %v110, %v110
    %v112 = vsel %vm100, %v111, 0.0
    %v113 = vrot.slane %v112, 4
    %v114 = vadd.f32 %v112, %v113
    %v115 = vrot.slane %v114, 2
    %v116 = vadd.f32 %v114, %v115
    %v117 = vrot.slane %v116, 1
    %v118 = vadd.f32 %v116, %v117
    %v119 = vmul.f32 %v118, %v108
    %v120 = vld [vmem:[%s4] sm:$0x1]
    %v121 = vadd.f32 %v119, 1e-05
    %v122 = vrsqrt.pop %v121
    %v123 = vmul.f32 %v120, %v122
    %v124 = vld [vmem:[%s4 + $0x1] sm:$0x1]
    %v125 = vmul.f32 %v109, %v123
    %v126 = vsub.f32 %v124, %v125
    %v127 = vlaneseq
    %v128 = vshrl.u32 %v127, 7
    %v129 = vsub.s32 0, %v128
    %v130 = vrot.slane %v123, %v129
    %v131 = vmul.f32 %v97, %v130
    %v132 = vlaneseq
    %v133 = vshrl.u32 %v132, 7
    %v134 = vsub.s32 0, %v133
    %v135 = vrot.slane %v126, %v134
    %v136 = vadd.f32 %v131, %v135
    %v137 = vmax.f32 %v136, 0.0
    %v138 = vld [vmem:[%s2] sm:$0xff]
    %v139 = vld [vmem:[%s2 + $0x8] sm:$0xff]
    %v140 = vld [vmem:[%s2 + $0x10] sm:$0xff]
    %v141 = vld [vmem:[%s2 + $0x18] sm:$0xff]
    %v142 = vld [vmem:[%s2 + $0x20] sm:$0xff]
    %v143 = vld [vmem:[%s2 + $0x28] sm:$0xff]
    %v144 = vld [vmem:[%s2 + $0x30] sm:$0xff]
    %v145 = vld [vmem:[%s2 + $0x38] sm:$0xff]
    %v147 = vsel %vm100, %v137, 0
    %149 = vmatprep.subr.mxu0 0.0
    %150 = vmatpush1.msra.mxu0 0.0
    %151 = vmatprep.subr.mxu0 0.0
    %152 = vmatpush1.msra.mxu0 0.0
    %153 = vmatprep.subr.mxu0 0.0
    %154 = vmatpush1.msra.mxu0 0.0
    %155 = vmatprep.subr.mxu0 0.0
    %156 = vmatpush1.msra.mxu0 0.0
    %157 = vmatprep.subr.mxu0 0.0
    %158 = vmatpush1.msra.mxu0 0.0
    %159 = vmatprep.subr.mxu0 0.0
    %160 = vmatpush1.msra.mxu0 0.0
    %161 = vmatprep.subr.mxu0 0.0
    %162 = vmatpush1.msra.mxu0 0.0
    %163 = vmatprep.subr.mxu0 0.0
    %164 = vmatpush1.msra.mxu0 0.0
    %165 = vmatprep.subr.mxu0 0.0
    %166 = vmatpush1.msra.mxu0 %v145
    %167 = vmatprep.subr.mxu0 0.0
    %168 = vmatpush1.msra.mxu0 %v144
    %169 = vmatprep.subr.mxu0 0.0
    %170 = vmatpush1.msra.mxu0 %v143
    %171 = vmatprep.subr.mxu0 0.0
    %172 = vmatpush1.msra.mxu0 %v142
    %173 = vmatprep.subr.mxu0 0.0
    %174 = vmatpush1.msra.mxu0 %v141
    %175 = vmatprep.subr.mxu0 0.0
    %176 = vmatpush1.msra.mxu0 %v140
    %177 = vmatprep.subr.mxu0 0.0
    %178 = vmatpush1.msra.mxu0 %v139
    %179 = vmatprep.subr.mxu0 0.0
    %180 = vmatpush1.msra.mxu0 %v138
    %181 = vmatprep.subr.mxu0 0.0
    %182 = vmatpush2.msra.mxu0 0.0
    %183 = vmatprep.subr.mxu0 0.0
    %184 = vmatpush2.msra.mxu0 0.0
    %185 = vmatprep.subr.mxu0 0.0
    %186 = vmatpush2.msra.mxu0 0.0
    %187 = vmatprep.subr.mxu0 0.0
    %188 = vmatpush2.msra.mxu0 0.0
    %189 = vmatprep.subr.mxu0 0.0
    %190 = vmatpush2.msra.mxu0 0.0
    %191 = vmatprep.subr.mxu0 0.0
    %192 = vmatpush2.msra.mxu0 0.0
    %193 = vmatprep.subr.mxu0 0.0
    %194 = vmatpush2.msra.mxu0 0.0
    %195 = vmatprep.subr.mxu0 0.0
    %196 = vmatpush2.msra.mxu0 0.0
    %197 = vmatprep.subr.mxu0 0.0
    %198 = vmatpush2.msra.mxu0 0.0
    %199 = vmatprep.subr.mxu0 0.0
    %200 = vmatpush2.msra.mxu0 0.0
    %201 = vmatprep.subr.mxu0 0.0
    %202 = vmatpush2.msra.mxu0 0.0
    %203 = vmatprep.subr.mxu0 0.0
    %204 = vmatpush2.msra.mxu0 0.0
    %205 = vmatprep.subr.mxu0 0.0
    %206 = vmatpush2.msra.mxu0 0.0
    %207 = vmatprep.subr.mxu0 0.0
    %208 = vmatpush2.msra.mxu0 0.0
    %209 = vmatprep.subr.mxu0 0.0
    %210 = vmatpush2.msra.mxu0 0.0
    %211 = vmatprep.subr.mxu0 0.0
    %212 = vmatpush2.msra.mxu0 0.0
    %213 = vmatprep.mubr.f32.mxu0 0.0
    %214 = vmatmul.mubr.f32.gmra.mxu0 %v147
    %v215 = vpop.f32.mrf.mxu0
    %v216 = vadd.f32 0.0, %v215
    %v217 = vpop.f32.mrf.mxu0
    %218 = vdwg.mxu0
    %v219 = vsel %vm26, %v216, 0.0
    %v220 = vrot.slane %v219, 4
    %v221 = vadd.f32 %v219, %v220
    %v222 = vrot.slane %v221, 2
    %v223 = vadd.f32 %v221, %v222
    %v224 = vrot.slane %v223, 1
    %v225 = vadd.f32 %v223, %v224
    %v226 = vmul.f32 %v225, %v108
    %v227 = vsub.f32 %v216, %v226
    %v228 = vmul.f32 %v227, %v227
    %v229 = vsel %vm26, %v228, 0.0
    %v230 = vrot.slane %v229, 4
    %v231 = vadd.f32 %v229, %v230
    %v232 = vrot.slane %v231, 2
    %v233 = vadd.f32 %v231, %v232
    %v234 = vrot.slane %v233, 1
    %v235 = vadd.f32 %v233, %v234
    %v236 = vmul.f32 %v235, %v108
    %v237 = vld [vmem:[%s4 + $0x2] sm:$0x1]
    %v238 = vadd.f32 %v236, 1e-05
    %v239 = vrsqrt.pop %v238
    %v240 = vmul.f32 %v237, %v239
    %v241 = vld [vmem:[%s4 + $0x3] sm:$0x1]
    %v242 = vmul.f32 %v226, %v240
    %v243 = vsub.f32 %v241, %v242
    %v244 = vlaneseq
    %v245 = vshrl.u32 %v244, 7
    %v246 = vsub.s32 0, %v245
    %v247 = vrot.slane %v240, %v246
    %v248 = vmul.f32 %v216, %v247
    %v249 = vlaneseq
    %v250 = vshrl.u32 %v249, 7
    %v251 = vsub.s32 0, %v250
    %v252 = vrot.slane %v243, %v251
    %v253 = vadd.f32 %v248, %v252
    %v254 = vmax.f32 %v253, 0.0
    %v255 = vld [vmem:[%s3] sm:$0xff]
    %v256 = vld [vmem:[%s3 + $0x8] sm:$0xff]
    %v257 = vld [vmem:[%s3 + $0x10] sm:$0xff]
    %v258 = vld [vmem:[%s3 + $0x18] sm:$0xff]
    %v259 = vld [vmem:[%s4 + $0x4] sm:$0x1]
    %v260 = vlaneseq
    %v261 = vshrl.u32 %v260, 7
    %v262 = vsub.s32 0, %v261
    %v263 = vrot.slane %v259, %v262
    %v265 = vsel %vm26, %v254, 0
    %267 = vmatprep.subr.mxu0 0.0
    %268 = vmatpush1.msra.mxu0 0.0
    %269 = vmatprep.subr.mxu0 0.0
    %270 = vmatpush1.msra.mxu0 0.0
    %271 = vmatprep.subr.mxu0 0.0
    %272 = vmatpush1.msra.mxu0 0.0
    %273 = vmatprep.subr.mxu0 0.0
    %274 = vmatpush1.msra.mxu0 0.0
    %275 = vmatprep.subr.mxu0 0.0
    %276 = vmatpush1.msra.mxu0 0.0
    %277 = vmatprep.subr.mxu0 0.0
    %278 = vmatpush1.msra.mxu0 0.0
    %279 = vmatprep.subr.mxu0 0.0
    %280 = vmatpush1.msra.mxu0 0.0
    %281 = vmatprep.subr.mxu0 0.0
    %282 = vmatpush1.msra.mxu0 0.0
    %283 = vmatprep.subr.mxu0 0.0
    %284 = vmatpush1.msra.mxu0 0.0
    %285 = vmatprep.subr.mxu0 0.0
    %286 = vmatpush1.msra.mxu0 0.0
    %287 = vmatprep.subr.mxu0 0.0
    %288 = vmatpush1.msra.mxu0 0.0
    %289 = vmatprep.subr.mxu0 0.0
    %290 = vmatpush1.msra.mxu0 0.0
    %291 = vmatprep.subr.mxu0 0.0
    %292 = vmatpush1.msra.mxu0 %v258
    %293 = vmatprep.subr.mxu0 0.0
    %294 = vmatpush1.msra.mxu0 %v257
    %295 = vmatprep.subr.mxu0 0.0
    %296 = vmatpush1.msra.mxu0 %v256
    %297 = vmatprep.subr.mxu0 0.0
    %298 = vmatpush1.msra.mxu0 %v255
    %299 = vmatprep.subr.mxu0 0.0
    %300 = vmatpush2.msra.mxu0 0.0
    %301 = vmatprep.subr.mxu0 0.0
    %302 = vmatpush2.msra.mxu0 0.0
    %303 = vmatprep.subr.mxu0 0.0
    %304 = vmatpush2.msra.mxu0 0.0
    %305 = vmatprep.subr.mxu0 0.0
    %306 = vmatpush2.msra.mxu0 0.0
    %307 = vmatprep.subr.mxu0 0.0
    %308 = vmatpush2.msra.mxu0 0.0
    %309 = vmatprep.subr.mxu0 0.0
    %310 = vmatpush2.msra.mxu0 0.0
    %311 = vmatprep.subr.mxu0 0.0
    %312 = vmatpush2.msra.mxu0 0.0
    %313 = vmatprep.subr.mxu0 0.0
    %314 = vmatpush2.msra.mxu0 0.0
    %315 = vmatprep.subr.mxu0 0.0
    %316 = vmatpush2.msra.mxu0 0.0
    %317 = vmatprep.subr.mxu0 0.0
    %318 = vmatpush2.msra.mxu0 0.0
    %319 = vmatprep.subr.mxu0 0.0
    %320 = vmatpush2.msra.mxu0 0.0
    %321 = vmatprep.subr.mxu0 0.0
    %322 = vmatpush2.msra.mxu0 0.0
    %323 = vmatprep.subr.mxu0 0.0
    %324 = vmatpush2.msra.mxu0 0.0
    %325 = vmatprep.subr.mxu0 0.0
    %326 = vmatpush2.msra.mxu0 0.0
    %327 = vmatprep.subr.mxu0 0.0
    %328 = vmatpush2.msra.mxu0 0.0
    %329 = vmatprep.subr.mxu0 0.0
    %330 = vmatpush2.msra.mxu0 0.0
    %331 = vmatprep.mubr.f32.mxu0 0.0
    %332 = vmatmul.mubr.f32.gmra.mxu0 %v265
    %v333 = vpop.f32.mrf.mxu0
    %v334 = vadd.f32 %v263, %v333
    %v335 = vpop.f32.mrf.mxu0
    %336 = vdwg.mxu0
    %337 = vmax.xlane.f32.xlu0 %v334
    %v338 = vpop.xlane.xlu0 %337
    %v339 = vsub.f32 %v334, %v338
    %v340 = vmul.f32 %v339, 1.442695
    %v341 = vpow.pop %v340
    %342 = vadd.xlane.f32.xlu0 %v341
    %v343 = vpop.xlane.xlu0 %342
    %v344 = vrcp.pop %v343
    %v345 = vmul.f32 %v343, %v344
    %v346 = vsub.f32 2.0, %v345
    %v347 = vmul.f32 %v344, %v346
    %v348 = vmul.f32 %v341, %v347
    %349 = vst [vmem:[#allocation2] sm:$0xff] %v348
    // Predicated region
    $region22: #{tpu_custom_call.1} parent=1 // pred_check
      _
    $region23: #{tpu_custom_call.1} parent=1 // pred_check_branch
      %351 = sbr.rel (0) target = $region25
    $region24: #{tpu_custom_call.1} parent=1 // pred_region
      %s353 = ssub.s32 128, 128
      %354 = vsyncadd [#allocation3], %s353
      %s356 = sshll.u32 [#allocation2], 4
      %s357 = int_to_ptr.vmem [resolvable:$true] %s356
      %359 = dma.vmem_to_hbm [thread:$0]  %s357, 128, %s5, [#allocation3]
    $region25: #{tpu_custom_call.1} parent=1 // pred_fallthru
      _
    // Predicated region
    $region26: #{tpu_custom_call.1} parent=1 // pred_check
      _
    $region27: #{tpu_custom_call.1} parent=1 // pred_check_branch
      %361 = sbr.rel (0) target = $region29
    $region28: #{tpu_custom_call.1} parent=1 // pred_region
      %362 = dma.done [#allocation3], 128
    $region29: #{tpu_custom_call.1} parent=1 // pred_fallthru
      _
    %363 = vsyncpa [#allocation3], 1

</llo_original>
